<compile_context>
chip_gen: v5e
topology: v5e:2x2
jax: 0.10.0
libtpu: 0.0.40
codegen_flags: <defaults>
</compile_context>

<pallas_src>
import jax
import jax.numpy as jnp
from jax.experimental import pallas as pl
from jax.experimental.pallas import tpu as pltpu

IN_FEATURES = 64
OUT_FEATURES = 32


def _linear_add_kernel(x3_ref, w_ref, b_ref, x2_ref, o_ref):
    # Single MXU pass, f32 accumulation; bias + residual add on the VPU.
    y = jnp.dot(x3_ref[...], w_ref[...], preferred_element_type=jnp.float32)
    o_ref[...] = (y + b_ref[...] + x2_ref[...]).astype(o_ref.dtype)


def linear_add(x2, x3, w, b):
    """v2 = x3 @ w + b + x2   (w is (in, out), b is (1, out), x2 is (B, out))."""
    B = x3.shape[0]
    return pl.pallas_call(
        _linear_add_kernel,
        out_shape=jax.ShapeDtypeStruct((B, OUT_FEATURES), jnp.float32),
        # Gridless: every operand fully VMEM-resident (total working set ~10 KB).
        in_specs=[
            pl.BlockSpec(memory_space=pltpu.MemorySpace.VMEM),  # x3 (B, 64)  f32
            pl.BlockSpec(memory_space=pltpu.MemorySpace.VMEM),  # w  (64, 32) f32
            pl.BlockSpec(memory_space=pltpu.MemorySpace.VMEM),  # b  (1, 32)  f32
            pl.BlockSpec(memory_space=pltpu.MemorySpace.VMEM),  # x2 (B, 32)  f32
        ],
        out_specs=pl.BlockSpec(memory_space=pltpu.MemorySpace.VMEM),
        # x2 has the output's exact shape/dtype -> reuse its buffer for the output.
        input_output_aliases={3: 0},
    )(x3, w, b, x2)


if __name__ == "__main__":
    key = jax.random.PRNGKey(0)
    k_x2, k_x3, k_w, k_b = jax.random.split(key, 4)

    # Batch of 8 rows (multiple of 8 f32 sublanes); module's semantics preserved.
    B = 8
    x3 = jax.random.normal(k_x3, (B, IN_FEATURES), dtype=jnp.float32)
    x2 = jax.random.normal(k_x2, (B, OUT_FEATURES), dtype=jnp.float32)

    # Deterministic parameter init (mimic nn.Linear's uniform(-1/sqrt(in), 1/sqrt(in)))
    bound = 1.0 / jnp.sqrt(jnp.float32(IN_FEATURES))
    w = jax.random.uniform(
        k_w, (IN_FEATURES, OUT_FEATURES), dtype=jnp.float32, minval=-bound, maxval=bound
    )
    b = jax.random.uniform(
        k_b, (1, OUT_FEATURES), dtype=jnp.float32, minval=-bound, maxval=bound
    )

    # Plain-JAX reference (full f32), computed before the kernel (x2 is aliased).
    ref = x3 @ w + b + x2

    out = linear_add(x2, x3, w, b)
    jax.block_until_ready(out)

    assert out.shape == (B, OUT_FEATURES)
    # Full f32 path -> tight tolerance.
    assert jnp.allclose(out, ref, atol=1e-5, rtol=1e-5)

    print("KERNEL_OK")
</pallas_src>

<mosaic_0001>
module attributes {stable_mosaic.version = 11 : i64} {
  func.func @_linear_add_kernel(%arg0: memref<8x64xf32, #tpu.memory_space<vmem>>, %arg1: memref<64x32xf32, #tpu.memory_space<vmem>>, %arg2: memref<1x32xf32, #tpu.memory_space<vmem>>, %arg3: memref<8x32xf32, #tpu.memory_space<vmem>>, %arg4: memref<8x32xf32, #tpu.memory_space<vmem>>) attributes {dimension_semantics = [], scalar_prefetch = 0 : i64, scratch_operands = 0 : i64, tpu.core_type = #tpu.core_type<tc>} {
    %c0 = arith.constant 0 : index
    %c0_0 = arith.constant 0 : index
    %0 = vector.load %arg0[%c0, %c0_0] : memref<8x64xf32, #tpu.memory_space<vmem>>, vector<8x64xf32>
    %c0_1 = arith.constant 0 : index
    %c0_2 = arith.constant 0 : index
    %1 = vector.load %arg1[%c0_1, %c0_2] : memref<64x32xf32, #tpu.memory_space<vmem>>, vector<64x32xf32>
    %cst = arith.constant dense<0.000000e+00> : vector<8x32xf32>
    %2 = tpu.matmul %0, %1, %cst {dimension_numbers = #tpu.dot_dimension_numbers<[1], [0], [0], [1], [0, 0, 1, 1], [], []>} : vector<8x64xf32>, vector<64x32xf32>, vector<8x32xf32> -> vector<8x32xf32>
    %c0_3 = arith.constant 0 : index
    %c0_4 = arith.constant 0 : index
    %3 = vector.load %arg2[%c0_3, %c0_4] : memref<1x32xf32, #tpu.memory_space<vmem>>, vector<1x32xf32>
    %4 = vector.broadcast %3 : vector<1x32xf32> to vector<8x32xf32>
    %5 = arith.addf %2, %4 : vector<8x32xf32>
    %c0_5 = arith.constant 0 : index
    %c0_6 = arith.constant 0 : index
    %6 = vector.load %arg3[%c0_5, %c0_6] : memref<8x32xf32, #tpu.memory_space<vmem>>, vector<8x32xf32>
    %7 = arith.addf %5, %6 : vector<8x32xf32>
    %c0_7 = arith.constant 0 : index
    %c0_8 = arith.constant 0 : index
    %8 = vector.load %arg4[%c0_7, %c0_8] : memref<8x32xf32, #tpu.memory_space<vmem>>, vector<8x32xf32>
    tpu.vector_store %arg4[%c0_7, %c0_8], %7 {strides = array<i32>} : memref<8x32xf32, #tpu.memory_space<vmem>>, vector<8x32xf32>,
    return
  }
}

</mosaic_0001>

<llo_original>
// kernel: tpu_custom_call.1
$region0: #{tpu_custom_call.1}
  #allocation0 [shape = 'u32[]', space=smem, size = 0x4, offset = 0x4, fixed_abs, tag = 'smem constant byte address 0x4 - core index']
  #allocation1 [shape = 'u32[72,128]{1,0:T(1,128)}', space=vmem, size = 0x9000, scoped, tag = 'internal scratch']
  %s0 = inlined_call_operand.vmem [shape: f32[8,64], index: 0, kind: input, shape index: {}]
  %s1 = inlined_call_operand.vmem [shape: f32[64,32], index: 1, kind: input, shape index: {}]
  %s2 = inlined_call_operand.vmem [shape: f32[1,32], index: 2, kind: input, shape index: {}]
  %s3 = inlined_call_operand.hbm [shape: f32[8,32], index: 3, kind: input, shape index: {}, may-alias: {3,4}]
  %s4 = inlined_call_operand.hbm [shape: f32[8,32], index: 4, kind: output, shape index: {}, may-alias: {3,4}]
  %s5 = sld [smem:[#allocation0]]
  $region30: #{tpu_custom_call.1} parent=0
    _
  %s7 = ssub.s32 1, %s5
  %s8 = scalar_select 0, %s7, %s5
  $region1: #{tpu_custom_call.1} parent=0
    #allocation2 [shape = 'u8[4096]{0}', space=vmem, size = 0x1000, scoped, tag = 'input window, operand 3, single buffered']
    #allocation3 [shape = 's32[1]{0}', space=sflag, size = 0x4, scoped, tag = 'scoped memory for tpu_custom_call.1']
    #allocation4 [shape = 's32[1]{0}', space=sflag, size = 0x4, scoped, tag = 'scoped memory for tpu_custom_call.1']
    #allocation5 [shape = 'u8[4096]{0}', space=vmem, size = 0x1000, scoped, tag = 'output window, operand 0, single buffered']
    %9 = vsyncpa [#allocation3], 0
    %10 = vsyncpa [#allocation4], 0
    // Predicated region
    $region2: #{tpu_custom_call.1} parent=1 // pred_check
      _
    $region3: #{tpu_custom_call.1} parent=1 // pred_check_branch
      %12 = sbr.rel (0) target = $region5
    $region4: #{tpu_custom_call.1} parent=1 // pred_region
      _
    $region5: #{tpu_custom_call.1} parent=1 // pred_fallthru
      _
    // Predicated region
    $region6: #{tpu_custom_call.1} parent=1 // pred_check
      _
    $region7: #{tpu_custom_call.1} parent=1 // pred_check_branch
      %14 = sbr.rel (0) target = $region9
    $region8: #{tpu_custom_call.1} parent=1 // pred_region
      _
    $region9: #{tpu_custom_call.1} parent=1 // pred_fallthru
      _
    // Predicated region
    $region10: #{tpu_custom_call.1} parent=1 // pred_check
      _
    $region11: #{tpu_custom_call.1} parent=1 // pred_check_branch
      %16 = sbr.rel (0) target = $region13
    $region12: #{tpu_custom_call.1} parent=1 // pred_region
      _
    $region13: #{tpu_custom_call.1} parent=1 // pred_fallthru
      _
    // Predicated region
    $region14: #{tpu_custom_call.1} parent=1 // pred_check
      _
    $region15: #{tpu_custom_call.1} parent=1 // pred_check_branch
      %18 = sbr.rel (0) target = $region17
    $region16: #{tpu_custom_call.1} parent=1 // pred_region
      %20 = vsyncadd [#allocation3], 0
      %s22 = sshll.u32 %s3, 4
      %s23 = int_to_ptr.hbm [resolvable:$true] %s22
      %s24 = sshll.u32 [#allocation2], 4
      %s25 = int_to_ptr.vmem [resolvable:$true] %s24
      %27 = dma.hbm_to_vmem [thread:$0]  %s23, 128, %s25, [#allocation3]
    $region17: #{tpu_custom_call.1} parent=1 // pred_fallthru
      _
    // Predicated region
    $region18: #{tpu_custom_call.1} parent=1 // pred_check
      _
    $region19: #{tpu_custom_call.1} parent=1 // pred_check_branch
      %29 = sbr.rel (0) target = $region21
    $region20: #{tpu_custom_call.1} parent=1 // pred_region
      %31 = dma.done [#allocation3], 128
    $region21: #{tpu_custom_call.1} parent=1 // pred_fallthru
      _
    %v32 = vld [vmem:[%s0] sm:$0xff]
    %v33 = vld [vmem:[%s1] sm:$0xff]
    %v34 = vld [vmem:[%s1 + $0x8] sm:$0xff]
    %v35 = vld [vmem:[%s1 + $0x10] sm:$0xff]
    %v36 = vld [vmem:[%s1 + $0x18] sm:$0xff]
    %v37 = vld [vmem:[%s1 + $0x20] sm:$0xff]
    %v38 = vld [vmem:[%s1 + $0x28] sm:$0xff]
    %v39 = vld [vmem:[%s1 + $0x30] sm:$0xff]
    %v40 = vld [vmem:[%s1 + $0x38] sm:$0xff]
    %v41 = vld [vmem:[%s2] sm:$0x1]
    %v43 = vperm.slane %v41, 0
    %vm45 = vcmask 523264
    %v47 = vsel %vm45, %v32, 0
    %49 = vmatpush.msra.mxu0 0.0
    %50 = vmatpush.msra.mxu0 0.0
    %51 = vmatpush.msra.mxu0 0.0
    %52 = vmatpush.msra.mxu0 0.0
    %53 = vmatpush.msra.mxu0 0.0
    %54 = vmatpush.msra.mxu0 0.0
    %55 = vmatpush.msra.mxu0 0.0
    %56 = vmatpush.msra.mxu0 0.0
    %57 = vmatpush.msra.mxu0 %v40
    %58 = vmatpush.msra.mxu0 %v39
    %59 = vmatpush.msra.mxu0 %v38
    %60 = vmatpush.msra.mxu0 %v37
    %61 = vmatpush.msra.mxu0 %v36
    %62 = vmatpush.msra.mxu0 %v35
    %63 = vmatpush.msra.mxu0 %v34
    %64 = vmatpush.msra.mxu0 %v33
    %65 = vmatmul.f32.gmra.mxu0 %v47
    %v66 = vpop.f32.mrf.mxu0
    %v67 = vadd.f32 %v43, %v66
    %68 = vdwg.mxu0
    %v69 = vld [vmem:[#allocation2] sm:$0xff]
    %v70 = vadd.f32 %v67, %v69
    %vm71 = vcmask 261120
    %72 = vst.msk [vmem:[#allocation5] sm:$0xff] %vm71, %v70
    // Predicated region
    $region22: #{tpu_custom_call.1} parent=1 // pred_check
      _
    $region23: #{tpu_custom_call.1} parent=1 // pred_check_branch
      %74 = sbr.rel (0) target = $region25
    $region24: #{tpu_custom_call.1} parent=1 // pred_region
      %76 = vsyncadd [#allocation4], 0
      %s78 = sshll.u32 [#allocation5], 4
      %s79 = int_to_ptr.vmem [resolvable:$true] %s78
      %s80 = sshll.u32 %s4, 4
      %s81 = int_to_ptr.hbm [resolvable:$true] %s80
      %83 = dma.vmem_to_hbm [thread:$0]  %s79, 128, %s81, [#allocation4]
    $region25: #{tpu_custom_call.1} parent=1 // pred_fallthru
      _
    // Predicated region
    $region26: #{tpu_custom_call.1} parent=1 // pred_check
      _
    $region27: #{tpu_custom_call.1} parent=1 // pred_check_branch
      %85 = sbr.rel (0) target = $region29
    $region28: #{tpu_custom_call.1} parent=1 // pred_region
      %87 = dma.done [#allocation4], 128
    $region29: #{tpu_custom_call.1} parent=1 // pred_fallthru
      _
    %88 = vsyncpa [#allocation3], 1
    %89 = vsyncpa [#allocation4], 1

</llo_original>
